<compile_context>
chip_gen: v7x
topology: tpu7x:2x2x1
jax: 0.10.0
libtpu: 0.0.40
codegen_flags: <defaults>
</compile_context>

<pallas_src>
import functools

import jax
import jax.numpy as jnp
from jax.experimental import pallas as pl
from jax.experimental.pallas import tpu as pltpu


def _sdpa_conv_kernel(xg_ref, w_ref, e_ref, wmat_ref, b_ref, o_ref):
    """Fused: weight broadcast + per-neighbor scaling + MXU matmul + bias + ReLU.

    xg_ref  : [1, TN, K*Cin] bf16  gathered (upsample-folded) neighbor features
    w_ref   : [TN, K]        bf16  per-node neighbor weights
    e_ref   : [K, K*Cin]     bf16  0/1 expansion matrix (broadcasts w over Cin)
    wmat_ref: [K*Cin, Cout]  bf16  conv weight, flattened over (k, c)
    b_ref   : [1, Cout]      f32   bias
    o_ref   : [1, TN, Cout]  f32
    """
    # Broadcast neighbor weights over the Cin axis with a tiny MXU matmul.
    # Exact: every output column of `e` has exactly one nonzero (1.0) entry.
    w_b = jnp.dot(w_ref[...], e_ref[...],
                  preferred_element_type=jnp.float32)          # [TN, K*Cin] f32
    scaled = (xg_ref[0] * w_b).astype(jnp.bfloat16)            # VPU elementwise
    acc = jnp.dot(scaled, wmat_ref[...],
                  preferred_element_type=jnp.float32)          # MXU, f32 accumulate
    acc = acc + b_ref[...]
    o_ref[0] = jnp.maximum(acc, 0.0).astype(o_ref.dtype)       # ReLU


def _round_up(a, b):
    return (a + b - 1) // b * b


@functools.partial(jax.jit, static_argnames=("unpool_size", "tile_n"))
def slb_upsample_forward(x, index, weight, conv_w, conv_b,
                         *, unpool_size, tile_n=512):
    """SLB_Upsample forward: nearest unpool -> SDPAConv -> ReLU.

    x       : [B, N, Cin]
    index   : [N_up, K]  int32 neighbor indices into the UPSAMPLED node axis
    weight  : [N_up, K]  float32 neighbor weights
    conv_w  : [K, Cin, Cout]
    conv_b  : [Cout]
    """
    B, N, Cin = x.shape
    N_up, K = index.shape
    Cout = conv_w.shape[-1]
    assert N_up == N * unpool_size, "index must be defined on the upsampled graph"

    # Tile over the (upsampled) node axis. bf16 blocks want sublane multiples of
    # 16; clamp for small inputs so we don't over-pad. tile_n=512 keeps the
    # double-buffered streams well inside v7x's 64 MiB VMEM even at large Cin;
    # v5e/v6e (128 MiB) could go larger.
    tile_n = min(tile_n, _round_up(N_up, 16))
    tile_n = _round_up(tile_n, 16)
    N_pad = _round_up(N_up, tile_n)
    if N_pad != N_up:
        pad = N_pad - N_up
        index = jnp.pad(index, ((0, pad), (0, 0)))     # index 0 is always valid
        weight = jnp.pad(weight, ((0, pad), (0, 0)))   # zero-weight rows -> junk, sliced off

    # 1) nearest up-sample folded into the gather index: x_up[n] == x[n // S].
    idx_src = index // unpool_size                     # [N_pad, K] into x's node axis

    # Data-dependent gather stays in XLA; done in bf16 on the *pre-upsample* x so
    # the K-expanded intermediate is half the bytes and no repeated x_up exists.
    KC = K * Cin
    xg = x.astype(jnp.bfloat16)[:, idx_src, :]         # [B, N_pad, K, Cin]
    xg = xg.reshape(B, N_pad, KC)

    w16 = weight.astype(jnp.bfloat16)                  # [N_pad, K]
    # 0/1 matrix that replicates each neighbor weight across its Cin channels.
    expand = (jnp.arange(KC, dtype=jnp.int32) // Cin
              == jnp.arange(K, dtype=jnp.int32)[:, None]).astype(jnp.bfloat16)
    wmat = conv_w.reshape(KC, Cout).astype(jnp.bfloat16)
    bias2d = conv_b.reshape(1, Cout).astype(jnp.float32)

    num_tiles = N_pad // tile_n

    out = pl.pallas_call(
        _sdpa_conv_kernel,
        out_shape=jax.ShapeDtypeStruct((B, N_pad, Cout), jnp.float32),
        grid_spec=pltpu.PrefetchScalarGridSpec(
            num_scalar_prefetch=0,
            # batch is the innermost grid axis: the (tile_n, K) weight block's
            # index does not change across it, so it stays VMEM-resident.
            grid=(num_tiles, B),
            in_specs=[
                pl.BlockSpec((1, tile_n, KC), lambda i, b: (b, i, 0)),  # xg
                pl.BlockSpec((tile_n, K),     lambda i, b: (i, 0)),     # weight
                pl.BlockSpec((K, KC),         lambda i, b: (0, 0)),     # expand
                pl.BlockSpec((KC, Cout),      lambda i, b: (0, 0)),     # conv W
                pl.BlockSpec((1, Cout),       lambda i, b: (0, 0)),     # bias
            ],
            out_specs=pl.BlockSpec((1, tile_n, Cout), lambda i, b: (b, i, 0)),
        ),
        compiler_params=pltpu.CompilerParams(
            dimension_semantics=("parallel", "parallel"),
            vmem_limit_bytes=32 * 1024 * 1024),
    )(xg, w16, expand, wmat, bias2d)

    return out[:, :N_up, :]


if __name__ == "__main__":
    # Small shapes consistent with the module.
    B, N, Cin, Cout = 2, 16, 4, 8
    unpool_size_sqrt = 2
    unpool_size = unpool_size_sqrt * unpool_size_sqrt        # 4
    N_up = N * unpool_size                                   # 64
    n_first_hop = 8
    K = n_first_hop + 1                                      # kernel_size = 9

    key = jax.random.PRNGKey(0)
    k_x, k_idx, k_w, k_cw, k_cb = jax.random.split(key, 5)

    x = jax.random.normal(k_x, (B, N, Cin), dtype=jnp.float32)

    # neighbor indices: position 0 = self, positions 1..K-1 = random neighbors
    self_idx = jnp.arange(N_up, dtype=jnp.int32)[:, None]
    nbr_idx = jax.random.randint(k_idx, (N_up, K - 1), 0, N_up, dtype=jnp.int32)
    index = jnp.concatenate([self_idx, nbr_idx], axis=1)     # [N_up, K]

    # neighbor weights: self weight 1.0, neighbor weights random
    nbr_w = jax.random.uniform(k_w, (N_up, K - 1), dtype=jnp.float32)
    weight = jnp.concatenate(
        [jnp.ones((N_up, 1), jnp.float32), nbr_w], axis=1)   # [N_up, K]

    # deterministic parameter init (shapes from SDPAConv(in=4, out=8, K=9))
    conv_w = (jax.random.normal(k_cw, (K, Cin, Cout), dtype=jnp.float32)
              * (1.0 / jnp.sqrt(K * Cin)))
    conv_b = jax.random.normal(k_cb, (Cout,), dtype=jnp.float32) * 0.01

    out = slb_upsample_forward(x, index, weight, conv_w, conv_b,
                               unpool_size=unpool_size)
    out = jax.block_until_ready(out)
    assert out.shape == (B, N_up, Cout), out.shape

    # Pure-JAX reference following the module (upsample -> SDPAConv -> ReLU),
    # with the same bf16 roundings the kernel path applies, so the comparison is
    # apples-to-apples.
    f32 = jnp.float32
    x16 = x.astype(jnp.bfloat16).astype(f32)
    w16 = weight.astype(jnp.bfloat16).astype(f32)
    cw16 = conv_w.astype(jnp.bfloat16).astype(f32)
    x_up = jnp.repeat(x16, unpool_size, axis=1)              # module-style upsample
    xg_ref = x_up[:, index, :]                               # [B, N_up, K, Cin]
    scaled_ref = (xg_ref * w16[None, :, :, None]).astype(jnp.bfloat16).astype(f32)
    ref = jnp.einsum("bnkc,kcd->bnd", scaled_ref, cw16,
                     precision=jax.lax.Precision.HIGHEST) + conv_b
    ref = jnp.maximum(ref, 0.0)

    max_err = float(jnp.max(jnp.abs(out - ref)))
    assert jnp.allclose(out, ref, atol=1e-3, rtol=1e-3), max_err

    print("KERNEL_OK")
</pallas_src>

<mosaic_0001>
module attributes {stable_mosaic.version = 11 : i64} {
  func.func @_sdpa_conv_kernel(%arg0: i32, %arg1: i32, %arg2: memref<1x64x36xbf16, #tpu.memory_space<vmem>>, %arg3: memref<64x9xbf16, #tpu.memory_space<vmem>>, %arg4: memref<9x36xbf16, #tpu.memory_space<vmem>>, %arg5: memref<36x8xbf16, #tpu.memory_space<vmem>>, %arg6: memref<1x8xf32, #tpu.memory_space<vmem>>, %arg7: memref<1x64x8xf32, #tpu.memory_space<vmem>>) attributes {dimension_semantics = [#tpu.dimension_semantics<parallel>, #tpu.dimension_semantics<parallel>], iteration_bounds = array<i64: 1, 2>, scalar_prefetch = 0 : i64, scratch_operands = 0 : i64, tpu.core_type = #tpu.core_type<tc>, window_params = [{transform_indices = @transform_0, window_bounds = array<i64: 1, 64, 36>}, {transform_indices = @transform_1, window_bounds = array<i64: 64, 9>}, {pipeline_mode = #tpu.pipeline_mode<synchronous>, transform_indices = @transform_2, window_bounds = array<i64: 9, 36>}, {pipeline_mode = #tpu.pipeline_mode<synchronous>, transform_indices = @transform_3, window_bounds = array<i64: 36, 8>}, {pipeline_mode = #tpu.pipeline_mode<synchronous>, transform_indices = @transform_4, window_bounds = array<i64: 1, 8>}, {transform_indices = @transform_5, window_bounds = array<i64: 1, 64, 8>}]} {
    %c0 = arith.constant 0 : index
    %c0_0 = arith.constant 0 : index
    %0 = vector.load %arg3[%c0, %c0_0] : memref<64x9xbf16, #tpu.memory_space<vmem>>, vector<64x9xbf16>
    %c0_1 = arith.constant 0 : index
    %c0_2 = arith.constant 0 : index
    %1 = vector.load %arg4[%c0_1, %c0_2] : memref<9x36xbf16, #tpu.memory_space<vmem>>, vector<9x36xbf16>
    %cst = arith.constant dense<0.000000e+00> : vector<64x36xf32>
    %2 = tpu.matmul %0, %1, %cst {dimension_numbers = #tpu.dot_dimension_numbers<[1], [0], [0], [1], [0, 0, 1, 1], [], []>} : vector<64x9xbf16>, vector<9x36xbf16>, vector<64x36xf32> -> vector<64x36xf32>
    %c0_3 = arith.constant 0 : index
    %c0_4 = arith.constant 0 : index
    %c0_5 = arith.constant 0 : index
    %3 = vector.load %arg2[%c0_3, %c0_4, %c0_5] : memref<1x64x36xbf16, #tpu.memory_space<vmem>>, vector<1x64x36xbf16>
    %4 = vector.shape_cast %3 : vector<1x64x36xbf16> to vector<64x36xbf16>
    %5 = arith.extf %4 : vector<64x36xbf16> to vector<64x36xf32>
    %6 = arith.mulf %5, %2 : vector<64x36xf32>
    %7 = arith.truncf %6 : vector<64x36xf32> to vector<64x36xbf16>
    %c0_6 = arith.constant 0 : index
    %c0_7 = arith.constant 0 : index
    %8 = vector.load %arg5[%c0_6, %c0_7] : memref<36x8xbf16, #tpu.memory_space<vmem>>, vector<36x8xbf16>
    %cst_8 = arith.constant dense<0.000000e+00> : vector<64x8xf32>
    %9 = tpu.matmul %7, %8, %cst_8 {dimension_numbers = #tpu.dot_dimension_numbers<[1], [0], [0], [1], [0, 0, 1, 1], [], []>} : vector<64x36xbf16>, vector<36x8xbf16>, vector<64x8xf32> -> vector<64x8xf32>
    %c0_9 = arith.constant 0 : index
    %c0_10 = arith.constant 0 : index
    %10 = vector.load %arg6[%c0_9, %c0_10] : memref<1x8xf32, #tpu.memory_space<vmem>>, vector<1x8xf32>
    %11 = vector.broadcast %10 : vector<1x8xf32> to vector<64x8xf32>
    %12 = arith.addf %9, %11 : vector<64x8xf32>
    %cst_11 = arith.constant 0.000000e+00 : f32
    %13 = vector.broadcast %cst_11 : f32 to vector<64x8xf32>
    %14 = arith.maximumf %12, %13 : vector<64x8xf32>
    %c0_12 = arith.constant 0 : index
    %c0_13 = arith.constant 0 : index
    %c0_14 = arith.constant 0 : index
    %15 = vector.load %arg7[%c0_12, %c0_13, %c0_14] : memref<1x64x8xf32, #tpu.memory_space<vmem>>, vector<1x64x8xf32>
    %16 = vector.shape_cast %15 : vector<1x64x8xf32> to vector<64x8xf32>
    %17 = vector.shape_cast %14 : vector<64x8xf32> to vector<1x64x8xf32>
    tpu.vector_store %arg7[%c0_12, %c0_13, %c0_14], %17 {strides = array<i32>} : memref<1x64x8xf32, #tpu.memory_space<vmem>>, vector<1x64x8xf32>,
    return
  }
  func.func @transform_0(%arg0: i32, %arg1: i32) -> (i32, i32, i32) {
    %c0_i32 = arith.constant 0 : i32
    %c0_i32_0 = arith.constant 0 : i32
    return %arg1, %arg0, %c0_i32 : i32, i32, i32
  }
  func.func @transform_1(%arg0: i32, %arg1: i32) -> (i32, i32) {
    %c0_i32 = arith.constant 0 : i32
    %c0_i32_0 = arith.constant 0 : i32
    return %arg0, %c0_i32 : i32, i32
  }
  func.func @transform_2(%arg0: i32, %arg1: i32) -> (i32, i32) {
    %c0_i32 = arith.constant 0 : i32
    %c0_i32_0 = arith.constant 0 : i32
    %c0_i32_1 = arith.constant 0 : i32
    return %c0_i32, %c0_i32_0 : i32, i32
  }
  func.func @transform_3(%arg0: i32, %arg1: i32) -> (i32, i32) {
    %c0_i32 = arith.constant 0 : i32
    %c0_i32_0 = arith.constant 0 : i32
    %c0_i32_1 = arith.constant 0 : i32
    return %c0_i32, %c0_i32_0 : i32, i32
  }
  func.func @transform_4(%arg0: i32, %arg1: i32) -> (i32, i32) {
    %c0_i32 = arith.constant 0 : i32
    %c0_i32_0 = arith.constant 0 : i32
    %c0_i32_1 = arith.constant 0 : i32
    return %c0_i32, %c0_i32_0 : i32, i32
  }
  func.func @transform_5(%arg0: i32, %arg1: i32) -> (i32, i32, i32) {
    %c0_i32 = arith.constant 0 : i32
    %c0_i32_0 = arith.constant 0 : i32
    return %arg1, %arg0, %c0_i32 : i32, i32, i32
  }
}

</mosaic_0001>

<llo_original>
// kernel: slb_upsample_forward.1
$region0: #{slb_upsample_forward.1}
  #allocation0 [shape = 'u32[]', space=smem, size = 0x4, offset = 0x4, fixed_abs, tag = 'smem constant byte address 0x4 - core index']
  #allocation1 [shape = 'u32[144,128]{1,0:T(1,128)}', space=vmem, size = 0x12000, scoped, tag = 'internal scratch']
  %s0 = inlined_call_operand.vmem [shape: bf16[2,64,36], index: 0, kind: input, shape index: {}]
  %s1 = inlined_call_operand.vmem [shape: bf16[64,9], index: 1, kind: input, shape index: {}]
  %s2 = inlined_call_operand.vmem [shape: bf16[9,36], index: 2, kind: input, shape index: {}]
  %s3 = inlined_call_operand.vmem [shape: bf16[36,8], index: 3, kind: input, shape index: {}]
  %s4 = inlined_call_operand.vmem [shape: f32[1,8], index: 4, kind: input, shape index: {}]
  %s5 = inlined_call_operand.vmem [shape: f32[2,64,8], index: 5, kind: output, shape index: {}]
  %s6 = sld [smem:[#allocation0]]
  $region53: #{slb_upsample_forward.1} parent=0
    _
  %s8 = ssub.s32 1, %s6
  %s9 = scalar_select 0, %s8, %s6
  loop: start=0, step=1, limit=4
  $region2: #{slb_upsample_forward.1} parent=0 // loop_pre_header
    _
  $region3: #{slb_upsample_forward.1} parent=0 // loop_header
    %s11 = sphi 0, %s15
    %p12 = scmp.ge.s32.totalorder %s11, 4
    %s18 = sphi 0, %s30
    %s19 = sphi 0, %s26
    %s20 = sphi 0, %s18
    %s21 = sphi 0, %s19
    %s22 = sphi 0, %s20
    %s23 = sphi 0, %s21
    %s35 = sphi 0, %s37
    %s38 = sphi 0, %s35
    %s39 = sphi 0, %s38
    %s55 = sphi 0, %s39
    %s61 = sphi 0, %s63
    %s64 = sphi 0, %s61
    %s65 = sphi 0, %s64
    %s81 = sphi 0, %s65
    %s85 = sphi 0, %s85
    %s87 = sphi 0, %s85
    %s88 = sphi 0, %s87
    %s102 = sphi 0, %s88
    %s106 = sphi 0, %s106
    %s108 = sphi 0, %s106
    %s109 = sphi 0, %s108
    %s123 = sphi 0, %s109
    %s127 = sphi 0, %s127
    %s129 = sphi 0, %s127
    %s130 = sphi 0, %s129
    %s144 = sphi 0, %s130
    %s152 = sphi 0, %s154
    %s155 = sphi 0, %s152
    %s156 = sphi 0, %s155
    %s172 = sphi 0, %s156
  $region4: #{slb_upsample_forward.1} parent=0 // loop_header_branch
    %14 = sbr.rel (%p12) target = $region8
  $region5: #{slb_upsample_forward.1} parent=0 // loop_body
    %s16 = ssub.s32 %s11, 1
    %s17 = ssub.s32 %s11, 2
    %s24 = sadd.s32 1, %s19
    %p25 = scmp.ge.s32.totalorder %s24, 2
    %s26 = scalar_select %p25, 0, %s24
    %s27 = sadd.s32 1, %s18
    %s28 = scalar_select %p25, %s27, %s18
    %p29 = scmp.ge.s32.totalorder %s28, 1
    %s30 = scalar_select %p29, 0, %s28
    %s31 = ssub.s32 %s19, %s26
    %s32 = ssub.s32 %s18, %s30
    %s33 = sor.u32 %s31, %s32
    %p34 = scmp.eq.s32.totalorder %s33, 0
    %s36 = sadd.s32 %s35, 1
    %s37 = scalar_select %p34, %s35, %s36
    %p40 = pneg %p34
    %p41 = scmp.eq.s32.totalorder %s11, 1
    %p42 = por %p40, %p41
    %p43 = scmp.ne.s32.totalorder %s35, %s38
    %p44 = scmp.eq.s32.totalorder %s11, 0
    %p45 = por %p43, %p44
    %p46 = scmp.ne.s32.totalorder %s35, %s38
    %p47 = scmp.eq.s32.totalorder %s16, 1
    %p48 = por %p46, %p47
    %p49 = scmp.ne.s32.totalorder %s38, %s39
    %p50 = scmp.eq.s32.totalorder %s16, 0
    %p51 = por %p49, %p50
    %p52 = scmp.ne.s32.totalorder %s38, %s39
    %p53 = scmp.eq.s32.totalorder %s17, 1
    %p54 = por %p52, %p53
    %p56 = scmp.ne.s32.totalorder %s39, %s55
    %p57 = scmp.eq.s32.totalorder %s17, 0
    %p58 = por %p56, %p57
    %s59 = ssub.s32 %s18, %s30
    %p60 = scmp.eq.s32.totalorder %s59, 0
    %s62 = sadd.s32 %s61, 1
    %s63 = scalar_select %p60, %s61, %s62
    %p66 = pneg %p60
    %p67 = scmp.eq.s32.totalorder %s11, 1
    %p68 = por %p66, %p67
    %p69 = scmp.ne.s32.totalorder %s61, %s64
    %p70 = scmp.eq.s32.totalorder %s11, 0
    %p71 = por %p69, %p70
    %p72 = scmp.ne.s32.totalorder %s61, %s64
    %p73 = scmp.eq.s32.totalorder %s16, 1
    %p74 = por %p72, %p73
    %p75 = scmp.ne.s32.totalorder %s64, %s65
    %p76 = scmp.eq.s32.totalorder %s16, 0
    %p77 = por %p75, %p76
    %p78 = scmp.ne.s32.totalorder %s64, %s65
    %p79 = scmp.eq.s32.totalorder %s17, 1
    %p80 = por %p78, %p79
    %p82 = scmp.ne.s32.totalorder %s65, %s81
    %p83 = scmp.eq.s32.totalorder %s17, 0
    %p84 = por %p82, %p83
    %s86 = sadd.s32 %s85, 1
    %p89 = scmp.eq.s32.totalorder %s11, 1
    %p90 = scmp.ne.s32.totalorder %s85, %s87
    %p91 = scmp.eq.s32.totalorder %s11, 0
    %p92 = por %p90, %p91
    %p93 = scmp.ne.s32.totalorder %s85, %s87
    %p94 = scmp.eq.s32.totalorder %s16, 1
    %p95 = por %p93, %p94
    %p96 = scmp.ne.s32.totalorder %s87, %s88
    %p97 = scmp.eq.s32.totalorder %s16, 0
    %p98 = por %p96, %p97
    %p99 = scmp.ne.s32.totalorder %s87, %s88
    %p100 = scmp.eq.s32.totalorder %s17, 1
    %p101 = por %p99, %p100
    %p103 = scmp.ne.s32.totalorder %s88, %s102
    %p104 = scmp.eq.s32.totalorder %s17, 0
    %p105 = por %p103, %p104
    %s107 = sadd.s32 %s106, 1
    %p110 = scmp.eq.s32.totalorder %s11, 1
    %p111 = scmp.ne.s32.totalorder %s106, %s108
    %p112 = scmp.eq.s32.totalorder %s11, 0
    %p113 = por %p111, %p112
    %p114 = scmp.ne.s32.totalorder %s106, %s108
    %p115 = scmp.eq.s32.totalorder %s16, 1
    %p116 = por %p114, %p115
    %p117 = scmp.ne.s32.totalorder %s108, %s109
    %p118 = scmp.eq.s32.totalorder %s16, 0
    %p119 = por %p117, %p118
    %p120 = scmp.ne.s32.totalorder %s108, %s109
    %p121 = scmp.eq.s32.totalorder %s17, 1
    %p122 = por %p120, %p121
    %p124 = scmp.ne.s32.totalorder %s109, %s123
    %p125 = scmp.eq.s32.totalorder %s17, 0
    %p126 = por %p124, %p125
    %s128 = sadd.s32 %s127, 1
    %p131 = scmp.eq.s32.totalorder %s11, 1
    %p132 = scmp.ne.s32.totalorder %s127, %s129
    %p133 = scmp.eq.s32.totalorder %s11, 0
    %p134 = por %p132, %p133
    %p135 = scmp.ne.s32.totalorder %s127, %s129
    %p136 = scmp.eq.s32.totalorder %s16, 1
    %p137 = por %p135, %p136
    %p138 = scmp.ne.s32.totalorder %s129, %s130
    %p139 = scmp.eq.s32.totalorder %s16, 0
    %p140 = por %p138, %p139
    %p141 = scmp.ne.s32.totalorder %s129, %s130
    %p142 = scmp.eq.s32.totalorder %s17, 1
    %p143 = por %p141, %p142
    %p145 = scmp.ne.s32.totalorder %s130, %s144
    %p146 = scmp.eq.s32.totalorder %s17, 0
    %p147 = por %p145, %p146
    %s148 = ssub.s32 %s19, %s26
    %s149 = ssub.s32 %s18, %s30
    %s150 = sor.u32 %s148, %s149
    %p151 = scmp.eq.s32.totalorder %s150, 0
    %s153 = sadd.s32 %s152, 1
    %s154 = scalar_select %p151, %s152, %s153
    %p157 = pneg %p151
    %p158 = scmp.eq.s32.totalorder %s11, 1
    %p159 = por %p157, %p158
    %p160 = scmp.ne.s32.totalorder %s152, %s155
    %p161 = scmp.eq.s32.totalorder %s11, 0
    %p162 = por %p160, %p161
    %p163 = scmp.ne.s32.totalorder %s152, %s155
    %p164 = scmp.eq.s32.totalorder %s16, 1
    %p165 = por %p163, %p164
    %p166 = scmp.ne.s32.totalorder %s155, %s156
    %p167 = scmp.eq.s32.totalorder %s16, 0
    %p168 = por %p166, %p167
    %p169 = scmp.ne.s32.totalorder %s155, %s156
    %p170 = scmp.eq.s32.totalorder %s17, 1
    %p171 = por %p169, %p170
    %p173 = scmp.ne.s32.totalorder %s156, %s172
    %p174 = scmp.eq.s32.totalorder %s17, 0
    %p175 = por %p173, %p174
    %p176 = scmp.le.s32.totalorder 1, %s11
    %p177 = scmp.lt.s32.totalorder %s11, 3
    %p178 = pnand %p176, %p177
    %p179 = pneg %p178
    // Predicated region
    $region9: #{slb_upsample_forward.1} parent=5 // pred_check
      _
    $region10: #{slb_upsample_forward.1} parent=5 // pred_check_branch
      %181 = sbr.rel (%p178) target = $region12
    $region11: #{slb_upsample_forward.1} parent=5 // pred_region
      %s182 = ssub.s32 %s11, 1
      // Predicated region
      $region13: #{slb_upsample_forward.1} parent=11 // pred_check
        %p183 = pneg %p77
      $region14: #{slb_upsample_forward.1} parent=11 // pred_check_branch
        %185 = sbr.rel (%p183) target = $region16
      $region15: #{slb_upsample_forward.1} parent=11 // pred_region
        %s186 = smul.u32 8, %s20
        %p187 = scmp.lt.s32.totalorder %s186, 7
        %s188 = scalar_select %p187, %s186, 7
        %s189 = smul.addr %s188, 4
        %s190 = scalar_lea.vmem %s1, %s189
        %s191 = smul.u32 8, %s20
      $region16: #{slb_upsample_forward.1} parent=11 // pred_fallthru
        _
      // Predicated region
      $region17: #{slb_upsample_forward.1} parent=11 // pred_check
        %p192 = pneg %p98
      $region18: #{slb_upsample_forward.1} parent=11 // pred_check_branch
        %194 = sbr.rel (%p192) target = $region20
      $region19: #{slb_upsample_forward.1} parent=11 // pred_region
        _
      $region20: #{slb_upsample_forward.1} parent=11 // pred_fallthru
        _
      // Predicated region
      $region21: #{slb_upsample_forward.1} parent=11 // pred_check
        %p195 = pneg %p119
      $region22: #{slb_upsample_forward.1} parent=11 // pred_check_branch
        %197 = sbr.rel (%p195) target = $region24
      $region23: #{slb_upsample_forward.1} parent=11 // pred_region
        _
      $region24: #{slb_upsample_forward.1} parent=11 // pred_fallthru
        _
      // Predicated region
      $region25: #{slb_upsample_forward.1} parent=11 // pred_check
        %p198 = pneg %p140
      $region26: #{slb_upsample_forward.1} parent=11 // pred_check_branch
        %200 = sbr.rel (%p198) target = $region28
      $region27: #{slb_upsample_forward.1} parent=11 // pred_region
        _
      $region28: #{slb_upsample_forward.1} parent=11 // pred_fallthru
        _
    $region12: #{slb_upsample_forward.1} parent=5 // pred_fallthru
      _
    %p201 = scmp.lt.s32.totalorder %s11, 2
    // Predicated region
    $region29: #{slb_upsample_forward.1} parent=5 // pred_check
      %p202 = pneg %p201
    $region30: #{slb_upsample_forward.1} parent=5 // pred_check_branch
      %204 = sbr.rel (%p202) target = $region32
    $region31: #{slb_upsample_forward.1} parent=5 // pred_region
      // Predicated region
      $region33: #{slb_upsample_forward.1} parent=31 // pred_check
        %p205 = pneg %p45
      $region34: #{slb_upsample_forward.1} parent=31 // pred_check_branch
        %207 = sbr.rel (%p205) target = $region36
      $region35: #{slb_upsample_forward.1} parent=31 // pred_region
        %s208 = smul.u32 8, %s18
        %p209 = scmp.lt.s32.totalorder %s19, 1
        %s210 = scalar_select %p209, %s19, 1
        %p211 = scmp.lt.s32.totalorder %s208, 7
        %s212 = scalar_select %p211, %s208, 7
        %s213 = smul.addr %s210, 8
        %s214 = sadd.s32 %s212, %s213
        %s215 = smul.addr %s214, 4
        %s216 = scalar_lea.vmem %s0, %s215
        %s217 = smul.u32 8, %s18
      $region36: #{slb_upsample_forward.1} parent=31 // pred_fallthru
        _
    $region32: #{slb_upsample_forward.1} parent=5 // pred_fallthru
      _
    %p218 = scmp.le.s32.totalorder 1, %s11
    %p219 = scmp.lt.s32.totalorder %s11, 3
    %p220 = pnand %p218, %p219
    %p221 = pneg %p220
    // Predicated region
    $region37: #{slb_upsample_forward.1} parent=5 // pred_check
      _
    $region38: #{slb_upsample_forward.1} parent=5 // pred_check_branch
      %223 = sbr.rel (%p220) target = $region40
    $region39: #{slb_upsample_forward.1} parent=5 // pred_region
      %s224 = ssub.s32 %s11, 1
      %s225 = smul.u32 8, %s20
      %p226 = scmp.lt.s32.totalorder %s21, 1
      %s227 = scalar_select %p226, %s21, 1
      %p228 = scmp.lt.s32.totalorder %s225, 7
      %s229 = scalar_select %p228, %s225, 7
      %s230 = smul.addr %s227, 8
      %s231 = sadd.s32 %s229, %s230
      %s232 = smul.addr %s231, 4
      %s233 = scalar_lea.vmem %s0, %s232
      %p234 = pneg %p51
      %p235 = pneg %p48
      %s236 = smul.u32 8, %s20
      %p237 = scmp.lt.s32.totalorder %s236, 7
      %s238 = scalar_select %p237, %s236, 7
      %s239 = smul.addr %s238, 4
      %s240 = scalar_lea.vmem %s1, %s239
      %p241 = pneg %p77
      %p242 = pneg %p74
      %p243 = pneg %p98
      %p244 = pneg %p95
      %p245 = pneg %p119
      %p246 = pneg %p116
      %p247 = pneg %p140
      %p248 = pneg %p137
      %p249 = pneg %p168
      %p250 = pneg %p165
      %s251 = smul.u32 8, %s20
      %p252 = scmp.lt.s32.totalorder %s21, 1
      %s253 = scalar_select %p252, %s21, 1
      %p254 = scmp.lt.s32.totalorder %s251, 7
      %s255 = scalar_select %p254, %s251, 7
      %s256 = smul.addr %s253, 8
      %s257 = sadd.s32 %s255, %s256
      %s258 = smul.addr %s257, 8
      %s259 = scalar_lea.vmem %s5, %s258
      %s260 = smul.u32 8, %s20
      %p261 = scmp.lt.s32.totalorder %s21, 1
      %s262 = scalar_select %p261, %s21, 1
      %p263 = scmp.lt.s32.totalorder %s260, 7
      %s264 = scalar_select %p263, %s260, 7
      %s265 = smul.addr %s262, 8
      %s266 = sadd.s32 %s264, %s265
      %s267 = smul.addr %s266, 4
      %s268 = scalar_lea.vmem %s0, %s267
      %s269 = smul.u32 8, %s20
      %s270 = smul.u32 8, %s20
      %p271 = scmp.lt.s32.totalorder %s270, 7
      %s272 = scalar_select %p271, %s270, 7
      %s273 = smul.addr %s272, 4
      %s274 = scalar_lea.vmem %s1, %s273
      %s275 = smul.u32 8, %s20
      %s276 = smul.u32 8, %s20
      %p277 = scmp.lt.s32.totalorder %s21, 1
      %s278 = scalar_select %p277, %s21, 1
      %p279 = scmp.lt.s32.totalorder %s276, 7
      %s280 = scalar_select %p279, %s276, 7
      %s281 = smul.addr %s278, 8
      %s282 = sadd.s32 %s280, %s281
      %s283 = smul.addr %s282, 8
      %s284 = scalar_lea.vmem %s5, %s283
      %s285 = smul.u32 8, %s20
      %v287 = vld [vmem:[%s274] sm:$0xf]
      %v288 = vld [vmem:[%s274 + $0x4] sm:$0xf]
      %v289 = vld [vmem:[%s274 + $0x8] sm:$0xf]
      %v290 = vld [vmem:[%s274 + $0xc] sm:$0xf]
      %v291 = vld [vmem:[%s274 + $0x10] sm:$0xf]
      %v292 = vld [vmem:[%s274 + $0x14] sm:$0xf]
      %v293 = vld [vmem:[%s274 + $0x18] sm:$0xf]
      %v294 = vld [vmem:[%s274 + $0x1c] sm:$0xf]
      %v295 = vld [vmem:[%s2] sm:$0xf]
      %v296 = vld [vmem:[%s2 + $0x4] sm:$0x1]
      %v305 = vunpack.c.l.b16 %v287
      %v306 = vunpack.c.l.b16 %v288
      %v307 = vunpack.c.l.b16 %v289
      %v308 = vunpack.c.l.b16 %v290
      %v309 = vunpack.c.l.b16 %v291
      %v310 = vunpack.c.l.b16 %v292
      %v311 = vunpack.c.l.b16 %v293
      %v312 = vunpack.c.l.b16 %v294
      %v313 = vpack.c.b16 %v306, %v305
      %v314 = vpack.c.b16 %v308, %v307
      %v315 = vpack.c.b16 %v310, %v309
      %v316 = vpack.c.b16 %v312, %v311
      %v319 = vunpack.c.l.b16 %v295
      %v320 = vunpack.c.l.b16 %v296
      %v321 = vpack.c.b16 %v320, %v319
      %vm322 = vcmask 72704
      %v324 = vsel %vm322, %v313, 0
      %v327 = vsel %vm322, %v314, 0
      %v330 = vsel %vm322, %v315, 0
      %v333 = vsel %vm322, %v316, 0
      %vm335 = vcmask 1043456
      %vm336 = vcmask 1044480
      %v337 = vsel %vm335, 4294967295, 65535
      %v338 = vsel %vm336, %v337, 0
      %v340 = vand.u32 %v321, %v338
      %342 = vmatprep.subr.bf16.mxu0 0
      %343 = vmatpush1.bf16.msra.mxu0 %v340
      %344 = vmatprep.subr.bf16.mxu0 0
      %345 = vmatpush1.bf16.msra.mxu0 0
      %346 = vmatprep.subr.bf16.mxu0 0
      %347 = vmatpush1.bf16.msra.mxu0 0
      %348 = vmatprep.subr.bf16.mxu0 0
      %349 = vmatpush1.bf16.msra.mxu0 0
      %350 = vmatprep.subr.bf16.mxu0 0
      %351 = vmatpush1.bf16.msra.mxu0 0
      %352 = vmatprep.subr.bf16.mxu0 0
      %353 = vmatpush1.bf16.msra.mxu0 0
      %354 = vmatprep.subr.bf16.mxu0 0
      %355 = vmatpush1.bf16.msra.mxu0 0
      %356 = vmatprep.subr.bf16.mxu0 0
      %357 = vmatpush1.bf16.msra.mxu0 0
      %358 = vmatprep.subr.bf16.mxu0 0
      %359 = vmatpush1.bf16.msra.mxu0 0
      %360 = vmatprep.subr.bf16.mxu0 0
      %361 = vmatpush1.bf16.msra.mxu0 0
      %362 = vmatprep.subr.bf16.mxu0 0
      %363 = vmatpush1.bf16.msra.mxu0 0
      %364 = vmatprep.subr.bf16.mxu0 0
      %365 = vmatpush1.bf16.msra.mxu0 0
      %366 = vmatprep.subr.bf16.mxu0 0
      %367 = vmatpush1.bf16.msra.mxu0 0
      %368 = vmatprep.subr.bf16.mxu0 0
      %369 = vmatpush1.bf16.msra.mxu0 0
      %370 = vmatprep.subr.bf16.mxu0 0
      %371 = vmatpush1.bf16.msra.mxu0 0
      %372 = vmatprep.subr.bf16.mxu0 0
      %373 = vmatpush1.bf16.msra.mxu0 0
      %374 = vmatprep.mubr.bf16.mxu0 0
      %375 = vmatmul.mubr.bf16.gmra.mrb[0].mxu0 %v324
      %v376 = vpop.f32.mrb[0].mxu0
      %v377 = vadd.f32 0.0, %v376
      %v378 = vpop.f32.mrb[0].mxu0
      %v379 = vpop.f32.mrb[0].mxu0
      %v380 = vadd.f32 0.0, %v379
      %v381 = vpop.f32.mrb[0].mxu0
      %382 = vmatprep.mubr.bf16.mxu0 0
      %383 = vmatmul.mubr.bf16.gmra.mrb[0].mxu0 %v327
      %v384 = vpop.f32.mrb[0].mxu0
      %v385 = vadd.f32 0.0, %v384
      %v386 = vpop.f32.mrb[0].mxu0
      %v387 = vpop.f32.mrb[0].mxu0
      %v388 = vadd.f32 0.0, %v387
      %v389 = vpop.f32.mrb[0].mxu0
      %390 = vmatprep.mubr.bf16.mxu0 0
      %391 = vmatmul.mubr.bf16.gmra.mrb[0].mxu0 %v330
      %v392 = vpop.f32.mrb[0].mxu0
      %v393 = vadd.f32 0.0, %v392
      %v394 = vpop.f32.mrb[0].mxu0
      %v395 = vpop.f32.mrb[0].mxu0
      %v396 = vadd.f32 0.0, %v395
      %v397 = vpop.f32.mrb[0].mxu0
      %398 = vmatprep.mubr.bf16.mxu0 0
      %399 = vmatmul.mubr.bf16.gmra.mrb[0].mxu0 %v333
      %v400 = vpop.f32.mrb[0].mxu0
      %v401 = vadd.f32 0.0, %v400
      %v402 = vpop.f32.mrb[0].mxu0
      %v403 = vpop.f32.mrb[0].mxu0
      %v404 = vadd.f32 0.0, %v403
      %v405 = vpop.f32.mrb[0].mxu0
      %406 = vdwg.mxu0
      %v407 = vld [vmem:[%s268] sm:$0xf]
      %v408 = vld [vmem:[%s268 + $0x4] sm:$0xf]
      %v409 = vld [vmem:[%s268 + $0x8] sm:$0xf]
      %v410 = vld [vmem:[%s268 + $0xc] sm:$0xf]
      %v411 = vld [vmem:[%s268 + $0x10] sm:$0xf]
      %v412 = vld [vmem:[%s268 + $0x14] sm:$0xf]
      %v413 = vld [vmem:[%s268 + $0x18] sm:$0xf]
      %v414 = vld [vmem:[%s268 + $0x1c] sm:$0xf]
      %v415 = vunpack.c.l.bf16 %v407
      %v416 = vunpack.c.l.bf16 %v408
      %v417 = vunpack.c.l.bf16 %v409
      %v418 = vunpack.c.l.bf16 %v410
      %v419 = vunpack.c.l.bf16 %v411
      %v420 = vunpack.c.l.bf16 %v412
      %v421 = vunpack.c.l.bf16 %v413
      %v422 = vunpack.c.l.bf16 %v414
      %v423 = vmul.f32 %v415, %v377
      %v424 = vmul.f32 %v416, %v380
      %v425 = vmul.f32 %v417, %v385
      %v426 = vmul.f32 %v418, %v388
      %v427 = vmul.f32 %v419, %v393
      %v428 = vmul.f32 %v420, %v396
      %v429 = vmul.f32 %v421, %v401
      %v430 = vmul.f32 %v422, %v404
      %v431 = vpack.c.bf16 %v424, %v423
      %v432 = vpack.c.bf16 %v426, %v425
      %v433 = vpack.c.bf16 %v428, %v427
      %v434 = vpack.c.bf16 %v430, %v429
      %v435 = vld [vmem:[%s3] sm:$0xf]
      %v436 = vld [vmem:[%s3 + $0x4] sm:$0xf]
      %v437 = vld [vmem:[%s3 + $0x8] sm:$0xf]
      %v438 = vld [vmem:[%s3 + $0xc] sm:$0xf]
      %v439 = vld [vmem:[%s3 + $0x10] sm:$0x3]
      %v440 = vld [vmem:[%s4] sm:$0x1]
      %v442 = vlaneseq
      %v443 = vshrl.u32 %v442, 7
      %v444 = vsub.s32 0, %v443
      %v445 = vrot.slane %v440, %v444
      %v452 = vunpack.c.l.b16 %v435
      %v453 = vunpack.c.l.b16 %v436
      %v454 = vunpack.c.l.b16 %v437
      %v455 = vunpack.c.l.b16 %v438
      %v456 = vunpack.c.l.b16 %v439
      %v457 = vpack.c.b16 %v453, %v452
      %v458 = vpack.c.b16 %v455, %v454
      %v459 = vpack.c.b16 %v456, %v456
      %vm462 = vcmask 293888
      %v464 = vsel %vm462, %v431, 0
      %v467 = vsel %vm462, %v432, 0
      %v470 = vsel %vm462, %v433, 0
      %v473 = vsel %vm462, %v434, 0
      %vm475 = vcmask 1041408
      %v477 = vsel %vm475, %v459, 0
      %479 = vmatprep.subr.bf16.mxu0 0
      %480 = vmatpush1.bf16.msra.mxu0 %v457
      %481 = vmatprep.subr.bf16.mxu0 0
      %482 = vmatpush1.bf16.msra.mxu0 %v458
      %483 = vmatprep.subr.bf16.mxu0 0
      %484 = vmatpush1.bf16.msra.mxu0 %v477
      %485 = vmatprep.subr.bf16.mxu0 0
      %486 = vmatpush1.bf16.msra.mxu0 0
      %487 = vmatprep.subr.bf16.mxu0 0
      %488 = vmatpush1.bf16.msra.mxu0 0
      %489 = vmatprep.subr.bf16.mxu0 0
      %490 = vmatpush1.bf16.msra.mxu0 0
      %491 = vmatprep.subr.bf16.mxu0 0
      %492 = vmatpush1.bf16.msra.mxu0 0
      %493 = vmatprep.subr.bf16.mxu0 0
      %494 = vmatpush1.bf16.msra.mxu0 0
      %495 = vmatprep.subr.bf16.mxu0 0
      %496 = vmatpush1.bf16.msra.mxu0 0
      %497 = vmatprep.subr.bf16.mxu0 0
      %498 = vmatpush1.bf16.msra.mxu0 0
      %499 = vmatprep.subr.bf16.mxu0 0
      %500 = vmatpush1.bf16.msra.mxu0 0
      %501 = vmatprep.subr.bf16.mxu0 0
      %502 = vmatpush1.bf16.msra.mxu0 0
      %503 = vmatprep.subr.bf16.mxu0 0
      %504 = vmatpush1.bf16.msra.mxu0 0
      %505 = vmatprep.subr.bf16.mxu0 0
      %506 = vmatpush1.bf16.msra.mxu0 0
      %507 = vmatprep.subr.bf16.mxu0 0
      %508 = vmatpush1.bf16.msra.mxu0 0
      %509 = vmatprep.subr.bf16.mxu0 0
      %510 = vmatpush1.bf16.msra.mxu0 0
      %511 = vmatprep.mubr.bf16.mxu0 0
      %512 = vmatmul.mubr.bf16.gmra.mrb[0].mxu0 %v464
      %v513 = vpop.f32.mrb[0].mxu0
      %v514 = vadd.f32 %v445, %v513
      %v515 = vpop.f32.mrb[0].mxu0
      %v516 = vpop.f32.mrb[0].mxu0
      %v517 = vadd.f32 %v445, %v516
      %v518 = vpop.f32.mrb[0].mxu0
      %519 = vmatprep.mubr.bf16.mxu0 0
      %520 = vmatmul.mubr.bf16.gmra.mrb[0].mxu0 %v467
      %v521 = vpop.f32.mrb[0].mxu0
      %v522 = vadd.f32 %v445, %v521
      %v523 = vpop.f32.mrb[0].mxu0
      %v524 = vpop.f32.mrb[0].mxu0
      %v525 = vadd.f32 %v445, %v524
      %v526 = vpop.f32.mrb[0].mxu0
      %527 = vmatprep.mubr.bf16.mxu0 0
      %528 = vmatmul.mubr.bf16.gmra.mrb[0].mxu0 %v470
      %v529 = vpop.f32.mrb[0].mxu0
      %v530 = vadd.f32 %v445, %v529
      %v531 = vpop.f32.mrb[0].mxu0
      %v532 = vpop.f32.mrb[0].mxu0
      %v533 = vadd.f32 %v445, %v532
      %v534 = vpop.f32.mrb[0].mxu0
      %535 = vmatprep.mubr.bf16.mxu0 0
      %536 = vmatmul.mubr.bf16.gmra.mrb[0].mxu0 %v473
      %v537 = vpop.f32.mrb[0].mxu0
      %v538 = vadd.f32 %v445, %v537
      %v539 = vpop.f32.mrb[0].mxu0
      %v540 = vpop.f32.mrb[0].mxu0
      %v541 = vadd.f32 %v445, %v540
      %v542 = vpop.f32.mrb[0].mxu0
      %543 = vdwg.mxu0
      %v544 = vmax.f32 %v514, 0.0
      %v545 = vmax.f32 %v517, 0.0
      %v546 = vmax.f32 %v522, 0.0
      %v547 = vmax.f32 %v525, 0.0
      %v548 = vmax.f32 %v530, 0.0
      %v549 = vmax.f32 %v533, 0.0
      %v550 = vmax.f32 %v538, 0.0
      %v551 = vmax.f32 %v541, 0.0
      %vm552 = vcmask 64512
      %553 = vst.msk [vmem:[%s284] sm:$0xff] %vm552, %v544
      %554 = vst.msk [vmem:[%s284 + $0x8] sm:$0xff] %vm552, %v545
      %555 = vst.msk [vmem:[%s284 + $0x10] sm:$0xff] %vm552, %v546
      %556 = vst.msk [vmem:[%s284 + $0x18] sm:$0xff] %vm552, %v547
      %557 = vst.msk [vmem:[%s284 + $0x20] sm:$0xff] %vm552, %v548
      %558 = vst.msk [vmem:[%s284 + $0x28] sm:$0xff] %vm552, %v549
      %559 = vst.msk [vmem:[%s284 + $0x30] sm:$0xff] %vm552, %v550
      %560 = vst.msk [vmem:[%s284 + $0x38] sm:$0xff] %vm552, %v551
      %s561 = smul.u32 8, %s20
      %p562 = scmp.lt.s32.totalorder %s21, 1
      %s563 = scalar_select %p562, %s21, 1
      %p564 = scmp.lt.s32.totalorder %s561, 7
      %s565 = scalar_select %p564, %s561, 7
      %s566 = smul.addr %s563, 8
      %s567 = sadd.s32 %s565, %s566
      %s568 = smul.addr %s567, 8
      %s569 = scalar_lea.vmem %s5, %s568
      // Predicated region
      $region41: #{slb_upsample_forward.1} parent=39 // pred_check
        %p570 = pneg %p165
      $region42: #{slb_upsample_forward.1} parent=39 // pred_check_branch
        %572 = sbr.rel (%p570) target = $region44
      $region43: #{slb_upsample_forward.1} parent=39 // pred_region
        %s573 = smul.u32 8, %s20
      $region44: #{slb_upsample_forward.1} parent=39 // pred_fallthru
        _
    $region40: #{slb_upsample_forward.1} parent=5 // pred_fallthru
      _
    %p574 = scmp.le.s32.totalorder 2, %s11
    // Predicated region
    $region45: #{slb_upsample_forward.1} parent=5 // pred_check
      %p575 = pneg %p574
    $region46: #{slb_upsample_forward.1} parent=5 // pred_check_branch
      %577 = sbr.rel (%p575) target = $region48
    $region47: #{slb_upsample_forward.1} parent=5 // pred_region
      %s578 = ssub.s32 %s11, 2
      // Predicated region
      $region49: #{slb_upsample_forward.1} parent=47 // pred_check
        %p579 = pneg %p171
      $region50: #{slb_upsample_forward.1} parent=47 // pred_check_branch
        %581 = sbr.rel (%p579) target = $region52
      $region51: #{slb_upsample_forward.1} parent=47 // pred_region
        %s582 = smul.u32 8, %s22
        %p583 = scmp.lt.s32.totalorder %s23, 1
        %s584 = scalar_select %p583, %s23, 1
        %p585 = scmp.lt.s32.totalorder %s582, 7
        %s586 = scalar_select %p585, %s582, 7
        %s587 = smul.addr %s584, 8
        %s588 = sadd.s32 %s586, %s587
        %s589 = smul.addr %s588, 8
        %s590 = scalar_lea.vmem %s5, %s589
      $region52: #{slb_upsample_forward.1} parent=47 // pred_fallthru
        _
    $region48: #{slb_upsample_forward.1} parent=5 // pred_fallthru
      _
  $region6: #{slb_upsample_forward.1} parent=0 // loop_footer
    %s15 = sadd.s32 1, %s11
  $region7: #{slb_upsample_forward.1} parent=0 // loop_footer_branch
    %10 = sbr.rel target = $region3
  $region8: #{slb_upsample_forward.1} parent=0 // loop_exit
    _

</llo_original>
